<compile_context>
chip_gen: v7x
topology: tpu7x:2x2x1
jax: 0.10.0
libtpu: 0.0.40
codegen_flags: <defaults>
</compile_context>

<pallas_src>
import functools

import jax
import jax.numpy as jnp
from jax.experimental import pallas as pl
from jax.experimental.pallas import tpu as pltpu


def _sge_kernel(x_ref, w_ref, b_ref, out_ref, *, hw):
    # x_ref: (G, CPG, HW) for the current batch element (batch dim squeezed).
    x = x_ref[...].astype(jnp.float32)                       # (G, CPG, HW)

    # Per-(group, channel) spatial average pool (lane-axis reduction, XLU).
    avg = jnp.mean(x, axis=2, keepdims=True)                 # (G, CPG, 1)

    # xn[g, :] = sum_c x[g, c, :] * avg[g, c].  CPG is tiny, so a VPU
    # broadcast-multiply + sublane reduce is cheaper than an MXU matmul.
    xn = jnp.sum(x * avg, axis=1)                            # (G, HW)

    # Per-group normalization over the spatial axis.
    # torch.Tensor.std defaults to the unbiased estimator (divisor N-1).
    mean = jnp.mean(xn, axis=1, keepdims=True)               # (G, 1)
    t = xn - mean
    var = jnp.sum(t * t, axis=1, keepdims=True) / (hw - 1)   # (G, 1)
    t = t / (jnp.sqrt(var) + 1e-5)

    # Learned per-group scale and bias, then the sigmoid gate.
    t = t * w_ref[...] + b_ref[...]                          # (G, HW)
    att = jax.nn.sigmoid(t)

    out_ref[...] = (x * att[:, None, :]).astype(out_ref.dtype)


def sge_pallas(x, weight, bias, groups):
    """x: (B, C, H, W); weight/bias: (1, groups, 1, 1) as in the PyTorch module."""
    B, C, H, W = x.shape
    assert C % groups == 0
    cpg = C // groups
    hw = H * W

    # Lane-dense layout: innermost dim = H*W (multiple of 128 for 16x16).
    xg = x.reshape(B, groups, cpg, hw)
    w = weight.reshape(groups, 1).astype(jnp.float32)
    b = bias.reshape(groups, 1).astype(jnp.float32)

    kernel = functools.partial(_sge_kernel, hw=hw)

    out = pl.pallas_call(
        kernel,
        out_shape=jax.ShapeDtypeStruct((B, groups, cpg, hw), x.dtype),
        grid_spec=pltpu.PrefetchScalarGridSpec(
            num_scalar_prefetch=0,
            grid=(B,),
            in_specs=[
                pl.BlockSpec((None, groups, cpg, hw), lambda i: (i, 0, 0, 0)),
                pl.BlockSpec((groups, 1), lambda i: (0, 0)),
                pl.BlockSpec((groups, 1), lambda i: (0, 0)),
            ],
            out_specs=pl.BlockSpec((None, groups, cpg, hw),
                                   lambda i: (i, 0, 0, 0)),
        ),
        compiler_params=pltpu.CompilerParams(
            dimension_semantics=("parallel",)),
    )(xg, w, b)
    return out.reshape(B, C, H, W)


def sge_reference(x, weight, bias, groups):
    """Pure-JAX reference matching the PyTorch SpatialGroupEnhance forward."""
    b, c, h, w = x.shape
    xg = x.reshape(b * groups, c // groups, h, w)
    avg = jnp.mean(xg, axis=(2, 3), keepdims=True)            # AdaptiveAvgPool2d(1)
    xn = jnp.sum(xg * avg, axis=1, keepdims=True)             # (b*g, 1, h, w)
    t = xn.reshape(b * groups, -1)
    t = t - jnp.mean(t, axis=1, keepdims=True)
    std = jnp.std(t, axis=1, keepdims=True, ddof=1) + 1e-5    # unbiased, as torch
    t = t / std
    t = t.reshape(b, groups, h, w)
    t = t * weight + bias
    t = t.reshape(b * groups, 1, h, w)
    out = xg * jax.nn.sigmoid(t)
    return out.reshape(b, c, h, w)


if __name__ == "__main__":
    B, C, H, W = 2, 32, 16, 16
    groups = 8

    key = jax.random.PRNGKey(0)
    kx, kw, kb = jax.random.split(key, 3)

    x = jax.random.normal(kx, (B, C, H, W), dtype=jnp.float32)
    # The module initializes weight/bias to zeros (which would make the gate a
    # constant 0.5); use non-trivial deterministic values so the check actually
    # exercises the per-group scale/bias path.
    weight = jax.random.normal(kw, (1, groups, 1, 1), dtype=jnp.float32)
    bias = jax.random.normal(kb, (1, groups, 1, 1), dtype=jnp.float32)

    out = jax.block_until_ready(
        jax.jit(functools.partial(sge_pallas, groups=groups))(x, weight, bias))
    ref = sge_reference(x, weight, bias, groups)

    assert out.shape == x.shape and out.dtype == x.dtype
    max_diff = float(jnp.max(jnp.abs(out - ref)))
    assert jnp.allclose(out, ref, atol=1e-5, rtol=1e-5), (
        "max abs diff %g" % max_diff)
    print("KERNEL_OK")
</pallas_src>

<mosaic_0001>
module attributes {stable_mosaic.version = 11 : i64} {
  func.func @_sge_kernel(%arg0: i32, %arg1: memref<1x8x4x256xf32, #tpu.memory_space<vmem>>, %arg2: memref<8x1xf32, #tpu.memory_space<vmem>>, %arg3: memref<8x1xf32, #tpu.memory_space<vmem>>, %arg4: memref<1x8x4x256xf32, #tpu.memory_space<vmem>>) attributes {dimension_semantics = [#tpu.dimension_semantics<parallel>], iteration_bounds = array<i64: 2>, scalar_prefetch = 0 : i64, scratch_operands = 0 : i64, tpu.core_type = #tpu.core_type<tc>, window_params = [{transform_indices = @transform_0, window_bounds = array<i64: 1, 8, 4, 256>}, {pipeline_mode = #tpu.pipeline_mode<synchronous>, transform_indices = @transform_1, window_bounds = array<i64: 8, 1>}, {pipeline_mode = #tpu.pipeline_mode<synchronous>, transform_indices = @transform_2, window_bounds = array<i64: 8, 1>}, {transform_indices = @transform_3, window_bounds = array<i64: 1, 8, 4, 256>}]} {
    %c0 = arith.constant 0 : index
    %c0_0 = arith.constant 0 : index
    %c0_1 = arith.constant 0 : index
    %c0_2 = arith.constant 0 : index
    %0 = vector.load %arg1[%c0, %c0_0, %c0_1, %c0_2] : memref<1x8x4x256xf32, #tpu.memory_space<vmem>>, vector<1x8x4x256xf32>
    %1 = vector.shape_cast %0 : vector<1x8x4x256xf32> to vector<8x4x256xf32>
    %cst = arith.constant dense<0.000000e+00> : vector<8x4xf32>
    %2 = vector.multi_reduction <add>, %1, %cst [2] : vector<8x4x256xf32> to vector<8x4xf32>
    %3 = vector.shape_cast %2 : vector<8x4xf32> to vector<8x4x1xf32>
    %cst_3 = arith.constant 2.560000e+02 : f32
    %4 = vector.broadcast %cst_3 : f32 to vector<8x4x1xf32>
    %5 = arith.divf %3, %4 : vector<8x4x1xf32>
    %6 = vector.broadcast %5 : vector<8x4x1xf32> to vector<8x4x256xf32>
    %7 = arith.mulf %1, %6 : vector<8x4x256xf32>
    %cst_4 = arith.constant dense<0.000000e+00> : vector<8x256xf32>
    %8 = vector.multi_reduction <add>, %7, %cst_4 [1] : vector<8x4x256xf32> to vector<8x256xf32>
    %cst_5 = arith.constant dense<0.000000e+00> : vector<8xf32>
    %9 = vector.multi_reduction <add>, %8, %cst_5 [1] : vector<8x256xf32> to vector<8xf32>
    %10 = vector.shape_cast %9 : vector<8xf32> to vector<8x1xf32>
    %cst_6 = arith.constant 2.560000e+02 : f32
    %11 = vector.broadcast %cst_6 : f32 to vector<8x1xf32>
    %12 = arith.divf %10, %11 : vector<8x1xf32>
    %13 = vector.broadcast %12 : vector<8x1xf32> to vector<8x256xf32>
    %14 = arith.subf %8, %13 : vector<8x256xf32>
    %15 = arith.mulf %14, %14 : vector<8x256xf32>
    %cst_7 = arith.constant dense<0.000000e+00> : vector<8xf32>
    %16 = vector.multi_reduction <add>, %15, %cst_7 [1] : vector<8x256xf32> to vector<8xf32>
    %17 = vector.shape_cast %16 : vector<8xf32> to vector<8x1xf32>
    %cst_8 = arith.constant 2.550000e+02 : f32
    %18 = vector.broadcast %cst_8 : f32 to vector<8x1xf32>
    %19 = arith.divf %17, %18 : vector<8x1xf32>
    %20 = math.sqrt %19 : vector<8x1xf32>
    %cst_9 = arith.constant 9.99999974E-6 : f32
    %21 = vector.broadcast %cst_9 : f32 to vector<8x1xf32>
    %22 = arith.addf %20, %21 : vector<8x1xf32>
    %23 = vector.broadcast %22 : vector<8x1xf32> to vector<8x256xf32>
    %24 = arith.divf %14, %23 : vector<8x256xf32>
    %c0_10 = arith.constant 0 : index
    %c0_11 = arith.constant 0 : index
    %25 = vector.load %arg2[%c0_10, %c0_11] : memref<8x1xf32, #tpu.memory_space<vmem>>, vector<8x1xf32>
    %26 = vector.broadcast %25 : vector<8x1xf32> to vector<8x256xf32>
    %27 = arith.mulf %24, %26 : vector<8x256xf32>
    %c0_12 = arith.constant 0 : index
    %c0_13 = arith.constant 0 : index
    %28 = vector.load %arg3[%c0_12, %c0_13] : memref<8x1xf32, #tpu.memory_space<vmem>>, vector<8x1xf32>
    %29 = vector.broadcast %28 : vector<8x1xf32> to vector<8x256xf32>
    %30 = arith.addf %27, %29 : vector<8x256xf32>
    %31 = arith.negf %30 : vector<8x256xf32>
    %32 = math.exp %31 : vector<8x256xf32>
    %cst_14 = arith.constant 1.000000e+00 : f32
    %33 = vector.broadcast %cst_14 : f32 to vector<8x256xf32>
    %34 = arith.addf %33, %32 : vector<8x256xf32>
    %35 = arith.divf %33, %34 : vector<8x256xf32>
    %36 = vector.shape_cast %35 : vector<8x256xf32> to vector<8x1x256xf32>
    %37 = vector.broadcast %36 : vector<8x1x256xf32> to vector<8x4x256xf32>
    %38 = arith.mulf %1, %37 : vector<8x4x256xf32>
    %c0_15 = arith.constant 0 : index
    %c0_16 = arith.constant 0 : index
    %c0_17 = arith.constant 0 : index
    %c0_18 = arith.constant 0 : index
    %39 = vector.load %arg4[%c0_15, %c0_16, %c0_17, %c0_18] : memref<1x8x4x256xf32, #tpu.memory_space<vmem>>, vector<1x8x4x256xf32>
    %40 = vector.shape_cast %39 : vector<1x8x4x256xf32> to vector<8x4x256xf32>
    %41 = vector.shape_cast %38 : vector<8x4x256xf32> to vector<1x8x4x256xf32>
    tpu.vector_store %arg4[%c0_15, %c0_16, %c0_17, %c0_18], %41 {strides = array<i32>} : memref<1x8x4x256xf32, #tpu.memory_space<vmem>>, vector<1x8x4x256xf32>,
    return
  }
  func.func @transform_0(%arg0: i32) -> (i32, i32, i32, i32) {
    %c0_i32 = arith.constant 0 : i32
    %c0_i32_0 = arith.constant 0 : i32
    %c0_i32_1 = arith.constant 0 : i32
    %c0_i32_2 = arith.constant 0 : i32
    return %arg0, %c0_i32, %c0_i32_0, %c0_i32_1 : i32, i32, i32, i32
  }
  func.func @transform_1(%arg0: i32) -> (i32, i32) {
    %c0_i32 = arith.constant 0 : i32
    %c0_i32_0 = arith.constant 0 : i32
    %c0_i32_1 = arith.constant 0 : i32
    return %c0_i32, %c0_i32_0 : i32, i32
  }
  func.func @transform_2(%arg0: i32) -> (i32, i32) {
    %c0_i32 = arith.constant 0 : i32
    %c0_i32_0 = arith.constant 0 : i32
    %c0_i32_1 = arith.constant 0 : i32
    return %c0_i32, %c0_i32_0 : i32, i32
  }
  func.func @transform_3(%arg0: i32) -> (i32, i32, i32, i32) {
    %c0_i32 = arith.constant 0 : i32
    %c0_i32_0 = arith.constant 0 : i32
    %c0_i32_1 = arith.constant 0 : i32
    %c0_i32_2 = arith.constant 0 : i32
    return %arg0, %c0_i32, %c0_i32_0, %c0_i32_1 : i32, i32, i32, i32
  }
}

</mosaic_0001>

<llo_original>
// kernel: sge_pallas.1
$region0: #{sge_pallas.1}
  #allocation0 [shape = 'u32[]', space=smem, size = 0x4, offset = 0x4, fixed_abs, tag = 'smem constant byte address 0x4 - core index']
  #allocation1 [shape = 'u32[144,128]{1,0:T(1,128)}', space=vmem, size = 0x12000, scoped, tag = 'internal scratch']
  %s0 = inlined_call_operand.vmem [shape: f32[2,8,4,256], index: 0, kind: input, shape index: {}]
  %s1 = inlined_call_operand.vmem [shape: f32[8,1], index: 1, kind: input, shape index: {}]
  %s2 = inlined_call_operand.vmem [shape: f32[8,1], index: 2, kind: input, shape index: {}]
  %s3 = inlined_call_operand.vmem [shape: f32[2,8,4,256], index: 3, kind: output, shape index: {}]
  %s4 = sld [smem:[#allocation0]]
  $region45: #{sge_pallas.1} parent=0
    _
  %s6 = ssub.s32 1, %s4
  %s7 = scalar_select 0, %s6, %s4
  loop: start=0, step=1, limit=4
  $region2: #{sge_pallas.1} parent=0 // loop_pre_header
    _
  $region3: #{sge_pallas.1} parent=0 // loop_header
    %s9 = sphi 0, %s13
    %p10 = scmp.ge.s32.totalorder %s9, 4
    %s19 = sphi 0, %s21
    %s22 = sphi 0, %s19
    %s23 = sphi 0, %s22
    %s39 = sphi 0, %s23
    %s43 = sphi 0, %s43
    %s45 = sphi 0, %s43
    %s46 = sphi 0, %s45
    %s60 = sphi 0, %s46
    %s64 = sphi 0, %s64
    %s66 = sphi 0, %s64
    %s67 = sphi 0, %s66
    %s81 = sphi 0, %s67
    %s87 = sphi 0, %s89
    %s90 = sphi 0, %s87
    %s91 = sphi 0, %s90
    %s107 = sphi 0, %s91
  $region4: #{sge_pallas.1} parent=0 // loop_header_branch
    %12 = sbr.rel (%p10) target = $region8
  $region5: #{sge_pallas.1} parent=0 // loop_body
    %s14 = ssub.s32 %s9, 1
    %s15 = ssub.s32 %s9, 2
    %s16 = sadd.s32 %s9, 1
    %s17 = ssub.s32 %s9, %s16
    %p18 = scmp.eq.s32.totalorder %s17, 0
    %s20 = sadd.s32 %s19, 1
    %s21 = scalar_select %p18, %s19, %s20
    %p24 = pneg %p18
    %p25 = scmp.eq.s32.totalorder %s9, 1
    %p26 = por %p24, %p25
    %p27 = scmp.ne.s32.totalorder %s19, %s22
    %p28 = scmp.eq.s32.totalorder %s9, 0
    %p29 = por %p27, %p28
    %p30 = scmp.ne.s32.totalorder %s19, %s22
    %p31 = scmp.eq.s32.totalorder %s14, 1
    %p32 = por %p30, %p31
    %p33 = scmp.ne.s32.totalorder %s22, %s23
    %p34 = scmp.eq.s32.totalorder %s14, 0
    %p35 = por %p33, %p34
    %p36 = scmp.ne.s32.totalorder %s22, %s23
    %p37 = scmp.eq.s32.totalorder %s15, 1
    %p38 = por %p36, %p37
    %p40 = scmp.ne.s32.totalorder %s23, %s39
    %p41 = scmp.eq.s32.totalorder %s15, 0
    %p42 = por %p40, %p41
    %s44 = sadd.s32 %s43, 1
    %p47 = scmp.eq.s32.totalorder %s9, 1
    %p48 = scmp.ne.s32.totalorder %s43, %s45
    %p49 = scmp.eq.s32.totalorder %s9, 0
    %p50 = por %p48, %p49
    %p51 = scmp.ne.s32.totalorder %s43, %s45
    %p52 = scmp.eq.s32.totalorder %s14, 1
    %p53 = por %p51, %p52
    %p54 = scmp.ne.s32.totalorder %s45, %s46
    %p55 = scmp.eq.s32.totalorder %s14, 0
    %p56 = por %p54, %p55
    %p57 = scmp.ne.s32.totalorder %s45, %s46
    %p58 = scmp.eq.s32.totalorder %s15, 1
    %p59 = por %p57, %p58
    %p61 = scmp.ne.s32.totalorder %s46, %s60
    %p62 = scmp.eq.s32.totalorder %s15, 0
    %p63 = por %p61, %p62
    %s65 = sadd.s32 %s64, 1
    %p68 = scmp.eq.s32.totalorder %s9, 1
    %p69 = scmp.ne.s32.totalorder %s64, %s66
    %p70 = scmp.eq.s32.totalorder %s9, 0
    %p71 = por %p69, %p70
    %p72 = scmp.ne.s32.totalorder %s64, %s66
    %p73 = scmp.eq.s32.totalorder %s14, 1
    %p74 = por %p72, %p73
    %p75 = scmp.ne.s32.totalorder %s66, %s67
    %p76 = scmp.eq.s32.totalorder %s14, 0
    %p77 = por %p75, %p76
    %p78 = scmp.ne.s32.totalorder %s66, %s67
    %p79 = scmp.eq.s32.totalorder %s15, 1
    %p80 = por %p78, %p79
    %p82 = scmp.ne.s32.totalorder %s67, %s81
    %p83 = scmp.eq.s32.totalorder %s15, 0
    %p84 = por %p82, %p83
    %s85 = ssub.s32 %s9, %s16
    %p86 = scmp.eq.s32.totalorder %s85, 0
    %s88 = sadd.s32 %s87, 1
    %s89 = scalar_select %p86, %s87, %s88
    %p92 = pneg %p86
    %p93 = scmp.eq.s32.totalorder %s9, 1
    %p94 = por %p92, %p93
    %p95 = scmp.ne.s32.totalorder %s87, %s90
    %p96 = scmp.eq.s32.totalorder %s9, 0
    %p97 = por %p95, %p96
    %p98 = scmp.ne.s32.totalorder %s87, %s90
    %p99 = scmp.eq.s32.totalorder %s14, 1
    %p100 = por %p98, %p99
    %p101 = scmp.ne.s32.totalorder %s90, %s91
    %p102 = scmp.eq.s32.totalorder %s14, 0
    %p103 = por %p101, %p102
    %p104 = scmp.ne.s32.totalorder %s90, %s91
    %p105 = scmp.eq.s32.totalorder %s15, 1
    %p106 = por %p104, %p105
    %p108 = scmp.ne.s32.totalorder %s91, %s107
    %p109 = scmp.eq.s32.totalorder %s15, 0
    %p110 = por %p108, %p109
    %p111 = scmp.le.s32.totalorder 1, %s9
    %p112 = scmp.lt.s32.totalorder %s9, 3
    %p113 = pnand %p111, %p112
    %p114 = pneg %p113
    // Predicated region
    $region9: #{sge_pallas.1} parent=5 // pred_check
      _
    $region10: #{sge_pallas.1} parent=5 // pred_check_branch
      %116 = sbr.rel (%p113) target = $region12
    $region11: #{sge_pallas.1} parent=5 // pred_region
      %s117 = ssub.s32 %s9, 1
      // Predicated region
      $region13: #{sge_pallas.1} parent=11 // pred_check
        %p118 = pneg %p56
      $region14: #{sge_pallas.1} parent=11 // pred_check_branch
        %120 = sbr.rel (%p118) target = $region16
      $region15: #{sge_pallas.1} parent=11 // pred_region
        _
      $region16: #{sge_pallas.1} parent=11 // pred_fallthru
        _
      // Predicated region
      $region17: #{sge_pallas.1} parent=11 // pred_check
        %p121 = pneg %p77
      $region18: #{sge_pallas.1} parent=11 // pred_check_branch
        %123 = sbr.rel (%p121) target = $region20
      $region19: #{sge_pallas.1} parent=11 // pred_region
        _
      $region20: #{sge_pallas.1} parent=11 // pred_fallthru
        _
    $region12: #{sge_pallas.1} parent=5 // pred_fallthru
      _
    %p124 = scmp.lt.s32.totalorder %s9, 2
    // Predicated region
    $region21: #{sge_pallas.1} parent=5 // pred_check
      %p125 = pneg %p124
    $region22: #{sge_pallas.1} parent=5 // pred_check_branch
      %127 = sbr.rel (%p125) target = $region24
    $region23: #{sge_pallas.1} parent=5 // pred_region
      // Predicated region
      $region25: #{sge_pallas.1} parent=23 // pred_check
        %p128 = pneg %p29
      $region26: #{sge_pallas.1} parent=23 // pred_check_branch
        %130 = sbr.rel (%p128) target = $region28
      $region27: #{sge_pallas.1} parent=23 // pred_region
        %p131 = scmp.lt.s32.totalorder %s9, 1
        %s132 = scalar_select %p131, %s9, 1
        %s133 = smul.addr %s132, 16
        %s134 = smul.addr %s133, 4
        %s135 = scalar_lea.vmem %s0, %s134
      $region28: #{sge_pallas.1} parent=23 // pred_fallthru
        _
    $region24: #{sge_pallas.1} parent=5 // pred_fallthru
      _
    %p136 = scmp.le.s32.totalorder 1, %s9
    %p137 = scmp.lt.s32.totalorder %s9, 3
    %p138 = pnand %p136, %p137
    %p139 = pneg %p138
    // Predicated region
    $region29: #{sge_pallas.1} parent=5 // pred_check
      _
    $region30: #{sge_pallas.1} parent=5 // pred_check_branch
      %141 = sbr.rel (%p138) target = $region32
    $region31: #{sge_pallas.1} parent=5 // pred_region
      %s142 = ssub.s32 %s9, 1
      %p143 = scmp.lt.s32.totalorder %s14, 1
      %s144 = scalar_select %p143, %s14, 1
      %s145 = smul.addr %s144, 16
      %s146 = smul.addr %s145, 4
      %s147 = scalar_lea.vmem %s0, %s146
      %p148 = pneg %p35
      %p149 = pneg %p32
      %p150 = pneg %p56
      %p151 = pneg %p53
      %p152 = pneg %p77
      %p153 = pneg %p74
      %p154 = pneg %p103
      %p155 = pneg %p100
      %p156 = scmp.lt.s32.totalorder %s14, 1
      %s157 = scalar_select %p156, %s14, 1
      %s158 = smul.addr %s157, 16
      %s159 = smul.addr %s158, 4
      %s160 = scalar_lea.vmem %s3, %s159
      %p161 = scmp.lt.s32.totalorder %s14, 1
      %s162 = scalar_select %p161, %s14, 1
      %s163 = smul.addr %s162, 16
      %s164 = smul.addr %s163, 4
      %s165 = scalar_lea.vmem %s0, %s164
      %p166 = scmp.lt.s32.totalorder %s14, 1
      %s167 = scalar_select %p166, %s14, 1
      %s168 = smul.addr %s167, 16
      %s169 = smul.addr %s168, 4
      %s170 = scalar_lea.vmem %s3, %s169
      %v171 = vld [vmem:[%s165] sm:$0xff]
      %v172 = vld [vmem:[%s165 + $0x8] sm:$0xff]
      %v173 = vld [vmem:[%s165 + $0x10] sm:$0xff]
      %v174 = vld [vmem:[%s165 + $0x18] sm:$0xff]
      %v175 = vld [vmem:[%s165 + $0x20] sm:$0xff]
      %v176 = vld [vmem:[%s165 + $0x28] sm:$0xff]
      %v177 = vld [vmem:[%s165 + $0x30] sm:$0xff]
      %v178 = vld [vmem:[%s165 + $0x38] sm:$0xff]
      %v187 = vcombine.high %v171, %v171
      %v188 = vcombine.high %v172, %v172
      %v189 = vcombine.high %v173, %v173
      %v190 = vcombine.high %v174, %v174
      %v191 = vcombine.high %v175, %v175
      %v192 = vcombine.high %v176, %v176
      %v193 = vcombine.high %v177, %v177
      %v194 = vcombine.high %v178, %v178
      %vm203 = vcmask 1043456
      %v204 = vsel %vm203, %v171, 0.0
      %v205 = vsel %vm203, %v187, 0.0
      %v206 = vadd.f32 %v204, %v205
      %207 = vadd.xlane.f32.xlu0 %v206
      %v208 = vpop.xlane.xlu0 %207
      %v209 = vsel %vm203, %v172, 0.0
      %v210 = vsel %vm203, %v188, 0.0
      %v211 = vadd.f32 %v209, %v210
      %212 = vadd.xlane.f32.xlu0 %v211
      %v213 = vpop.xlane.xlu0 %212
      %v214 = vsel %vm203, %v173, 0.0
      %v215 = vsel %vm203, %v189, 0.0
      %v216 = vadd.f32 %v214, %v215
      %217 = vadd.xlane.f32.xlu0 %v216
      %v218 = vpop.xlane.xlu0 %217
      %v219 = vsel %vm203, %v174, 0.0
      %v220 = vsel %vm203, %v190, 0.0
      %v221 = vadd.f32 %v219, %v220
      %222 = vadd.xlane.f32.xlu0 %v221
      %v223 = vpop.xlane.xlu0 %222
      %v224 = vsel %vm203, %v175, 0.0
      %v225 = vsel %vm203, %v191, 0.0
      %v226 = vadd.f32 %v224, %v225
      %227 = vadd.xlane.f32.xlu0 %v226
      %v228 = vpop.xlane.xlu0 %227
      %v229 = vsel %vm203, %v176, 0.0
      %v230 = vsel %vm203, %v192, 0.0
      %v231 = vadd.f32 %v229, %v230
      %232 = vadd.xlane.f32.xlu0 %v231
      %v233 = vpop.xlane.xlu0 %232
      %v234 = vsel %vm203, %v177, 0.0
      %v235 = vsel %vm203, %v193, 0.0
      %v236 = vadd.f32 %v234, %v235
      %237 = vadd.xlane.f32.xlu0 %v236
      %v238 = vpop.xlane.xlu0 %237
      %v239 = vsel %vm203, %v178, 0.0
      %v240 = vsel %vm203, %v194, 0.0
      %v241 = vadd.f32 %v239, %v240
      %242 = vadd.xlane.f32.xlu0 %v241
      %v243 = vpop.xlane.xlu0 %242
      %v244 = vrcp.pop 256.0
      %v245 = vmul.f32 %v208, %v244
      %v246 = vmul.f32 %v213, %v244
      %v247 = vmul.f32 %v218, %v244
      %v248 = vmul.f32 %v223, %v244
      %v249 = vmul.f32 %v228, %v244
      %v250 = vmul.f32 %v233, %v244
      %v251 = vmul.f32 %v238, %v244
      %v252 = vmul.f32 %v243, %v244
      %v262 = vunpack.c.l.s4 839922192
      %v263 = vunpack.c.0.s8 %v262
      %v264 = vlaneseq
      %v265 = vshrl.u32 %v264, 7
      %v266 = vsub.s32 %v263, %v265
      %v267 = vrot.slane %v245, %v266
      %v269 = vunpack.c.l.s4 839922192
      %v270 = vunpack.c.0.s8 %v269
      %v271 = vlaneseq
      %v272 = vshrl.u32 %v271, 7
      %v273 = vsub.s32 %v270, %v272
      %v274 = vrot.slane %v246, %v273
      %v276 = vunpack.c.l.s4 839922192
      %v277 = vunpack.c.0.s8 %v276
      %v278 = vlaneseq
      %v279 = vshrl.u32 %v278, 7
      %v280 = vsub.s32 %v277, %v279
      %v281 = vrot.slane %v247, %v280
      %v283 = vunpack.c.l.s4 839922192
      %v284 = vunpack.c.0.s8 %v283
      %v285 = vlaneseq
      %v286 = vshrl.u32 %v285, 7
      %v287 = vsub.s32 %v284, %v286
      %v288 = vrot.slane %v248, %v287
      %v290 = vunpack.c.l.s4 839922192
      %v291 = vunpack.c.0.s8 %v290
      %v292 = vlaneseq
      %v293 = vshrl.u32 %v292, 7
      %v294 = vsub.s32 %v291, %v293
      %v295 = vrot.slane %v249, %v294
      %v297 = vunpack.c.l.s4 839922192
      %v298 = vunpack.c.0.s8 %v297
      %v299 = vlaneseq
      %v300 = vshrl.u32 %v299, 7
      %v301 = vsub.s32 %v298, %v300
      %v302 = vrot.slane %v250, %v301
      %v304 = vunpack.c.l.s4 839922192
      %v305 = vunpack.c.0.s8 %v304
      %v306 = vlaneseq
      %v307 = vshrl.u32 %v306, 7
      %v308 = vsub.s32 %v305, %v307
      %v309 = vrot.slane %v251, %v308
      %v311 = vunpack.c.l.s4 839922192
      %v312 = vunpack.c.0.s8 %v311
      %v313 = vlaneseq
      %v314 = vshrl.u32 %v313, 7
      %v315 = vsub.s32 %v312, %v314
      %v316 = vrot.slane %v252, %v315
      %v325 = vmul.f32 %v171, %v267
      %v326 = vmul.f32 %v172, %v274
      %v327 = vmul.f32 %v173, %v281
      %v328 = vmul.f32 %v174, %v288
      %v329 = vmul.f32 %v175, %v295
      %v330 = vmul.f32 %v176, %v302
      %v331 = vmul.f32 %v177, %v309
      %v332 = vmul.f32 %v178, %v316
      %v341 = vcombine.high %v325, %v325
      %v342 = vcombine.high %v326, %v326
      %v343 = vcombine.high %v327, %v327
      %v344 = vcombine.high %v328, %v328
      %v345 = vcombine.high %v329, %v329
      %v346 = vcombine.high %v330, %v330
      %v347 = vcombine.high %v331, %v331
      %v348 = vcombine.high %v332, %v332
      %v357 = vsel %vm203, %v325, 0.0
      %v358 = vrot.slane %v357, 4
      %v359 = vadd.f32 %v357, %v358
      %v360 = vrot.slane %v359, 2
      %v361 = vadd.f32 %v359, %v360
      %v362 = vrot.slane %v361, 1
      %v363 = vadd.f32 %v361, %v362
      %v364 = vsel %vm203, %v341, 0.0
      %v365 = vrot.slane %v364, 4
      %v366 = vadd.f32 %v364, %v365
      %v367 = vrot.slane %v366, 2
      %v368 = vadd.f32 %v366, %v367
      %v369 = vrot.slane %v368, 1
      %v370 = vadd.f32 %v368, %v369
      %v371 = vsel %vm203, %v326, 0.0
      %v372 = vrot.slane %v371, 4
      %v373 = vadd.f32 %v371, %v372
      %v374 = vrot.slane %v373, 2
      %v375 = vadd.f32 %v373, %v374
      %v376 = vrot.slane %v375, 1
      %v377 = vadd.f32 %v375, %v376
      %v378 = vsel %vm203, %v342, 0.0
      %v379 = vrot.slane %v378, 4
      %v380 = vadd.f32 %v378, %v379
      %v381 = vrot.slane %v380, 2
      %v382 = vadd.f32 %v380, %v381
      %v383 = vrot.slane %v382, 1
      %v384 = vadd.f32 %v382, %v383
      %v385 = vsel %vm203, %v327, 0.0
      %v386 = vrot.slane %v385, 4
      %v387 = vadd.f32 %v385, %v386
      %v388 = vrot.slane %v387, 2
      %v389 = vadd.f32 %v387, %v388
      %v390 = vrot.slane %v389, 1
      %v391 = vadd.f32 %v389, %v390
      %v392 = vsel %vm203, %v343, 0.0
      %v393 = vrot.slane %v392, 4
      %v394 = vadd.f32 %v392, %v393
      %v395 = vrot.slane %v394, 2
      %v396 = vadd.f32 %v394, %v395
      %v397 = vrot.slane %v396, 1
      %v398 = vadd.f32 %v396, %v397
      %v399 = vsel %vm203, %v328, 0.0
      %v400 = vrot.slane %v399, 4
      %v401 = vadd.f32 %v399, %v400
      %v402 = vrot.slane %v401, 2
      %v403 = vadd.f32 %v401, %v402
      %v404 = vrot.slane %v403, 1
      %v405 = vadd.f32 %v403, %v404
      %v406 = vsel %vm203, %v344, 0.0
      %v407 = vrot.slane %v406, 4
      %v408 = vadd.f32 %v406, %v407
      %v409 = vrot.slane %v408, 2
      %v410 = vadd.f32 %v408, %v409
      %v411 = vrot.slane %v410, 1
      %v412 = vadd.f32 %v410, %v411
      %v413 = vsel %vm203, %v329, 0.0
      %v414 = vrot.slane %v413, 4
      %v415 = vadd.f32 %v413, %v414
      %v416 = vrot.slane %v415, 2
      %v417 = vadd.f32 %v415, %v416
      %v418 = vrot.slane %v417, 1
      %v419 = vadd.f32 %v417, %v418
      %v420 = vsel %vm203, %v345, 0.0
      %v421 = vrot.slane %v420, 4
      %v422 = vadd.f32 %v420, %v421
      %v423 = vrot.slane %v422, 2
      %v424 = vadd.f32 %v422, %v423
      %v425 = vrot.slane %v424, 1
      %v426 = vadd.f32 %v424, %v425
      %v427 = vsel %vm203, %v330, 0.0
      %v428 = vrot.slane %v427, 4
      %v429 = vadd.f32 %v427, %v428
      %v430 = vrot.slane %v429, 2
      %v431 = vadd.f32 %v429, %v430
      %v432 = vrot.slane %v431, 1
      %v433 = vadd.f32 %v431, %v432
      %v434 = vsel %vm203, %v346, 0.0
      %v435 = vrot.slane %v434, 4
      %v436 = vadd.f32 %v434, %v435
      %v437 = vrot.slane %v436, 2
      %v438 = vadd.f32 %v436, %v437
      %v439 = vrot.slane %v438, 1
      %v440 = vadd.f32 %v438, %v439
      %v441 = vsel %vm203, %v331, 0.0
      %v442 = vrot.slane %v441, 4
      %v443 = vadd.f32 %v441, %v442
      %v444 = vrot.slane %v443, 2
      %v445 = vadd.f32 %v443, %v444
      %v446 = vrot.slane %v445, 1
      %v447 = vadd.f32 %v445, %v446
      %v448 = vsel %vm203, %v347, 0.0
      %v449 = vrot.slane %v448, 4
      %v450 = vadd.f32 %v448, %v449
      %v451 = vrot.slane %v450, 2
      %v452 = vadd.f32 %v450, %v451
      %v453 = vrot.slane %v452, 1
      %v454 = vadd.f32 %v452, %v453
      %v455 = vsel %vm203, %v332, 0.0
      %v456 = vrot.slane %v455, 4
      %v457 = vadd.f32 %v455, %v456
      %v458 = vrot.slane %v457, 2
      %v459 = vadd.f32 %v457, %v458
      %v460 = vrot.slane %v459, 1
      %v461 = vadd.f32 %v459, %v460
      %v462 = vsel %vm203, %v348, 0.0
      %v463 = vrot.slane %v462, 4
      %v464 = vadd.f32 %v462, %v463
      %v465 = vrot.slane %v464, 2
      %v466 = vadd.f32 %v464, %v465
      %v467 = vrot.slane %v466, 1
      %v468 = vadd.f32 %v466, %v467
      %vm485 = vcmask 1041409
      %v486 = vsel %vm485, %v377, %v363
      %vm487 = vcmask 1042434
      %v488 = vsel %vm487, %v391, %v486
      %vm489 = vcmask 1043459
      %v490 = vsel %vm489, %v405, %v488
      %vm491 = vcmask 1044484
      %v492 = vsel %vm491, %v419, %v490
      %vm493 = vcmask 1045509
      %v494 = vsel %vm493, %v433, %v492
      %vm495 = vcmask 1046534
      %v496 = vsel %vm495, %v447, %v494
      %vm497 = vcmask 1047559
      %v498 = vsel %vm497, %v461, %v496
      %v499 = vsel %vm485, %v384, %v370
      %v500 = vsel %vm487, %v398, %v499
      %v501 = vsel %vm489, %v412, %v500
      %v502 = vsel %vm491, %v426, %v501
      %v503 = vsel %vm493, %v440, %v502
      %v504 = vsel %vm495, %v454, %v503
      %v505 = vsel %vm497, %v468, %v504
      %v508 = vadd.f32 %v498, %v505
      %509 = vadd.xlane.f32.xlu0 %v508
      %v510 = vpop.xlane.xlu0 %509
      %v511 = vmul.f32 %v510, %v244
      %v513 = vrot.slane %v511, 1
      %v514 = vrot.slane %v511, 2
      %v515 = vrot.slane %v511, 3
      %v516 = vrot.slane %v511, 4
      %v517 = vrot.slane %v511, 5
      %v518 = vrot.slane %v511, 6
      %v519 = vrot.slane %v511, 7
      %v528 = vsub.f32 %v363, %v511
      %v529 = vsub.f32 %v370, %v511
      %v530 = vsub.f32 %v377, %v513
      %v531 = vsub.f32 %v384, %v513
      %v532 = vsub.f32 %v391, %v514
      %v533 = vsub.f32 %v398, %v514
      %v534 = vsub.f32 %v405, %v515
      %v535 = vsub.f32 %v412, %v515
      %v536 = vsub.f32 %v419, %v516
      %v537 = vsub.f32 %v426, %v516
      %v538 = vsub.f32 %v433, %v517
      %v539 = vsub.f32 %v440, %v517
      %v540 = vsub.f32 %v447, %v518
      %v541 = vsub.f32 %v454, %v518
      %v542 = vsub.f32 %v461, %v519
      %v543 = vsub.f32 %v468, %v519
      %v544 = vmul.f32 %v528, %v528
      %v545 = vmul.f32 %v529, %v529
      %v546 = vmul.f32 %v530, %v530
      %v547 = vmul.f32 %v531, %v531
      %v548 = vmul.f32 %v532, %v532
      %v549 = vmul.f32 %v533, %v533
      %v550 = vmul.f32 %v534, %v534
      %v551 = vmul.f32 %v535, %v535
      %v552 = vmul.f32 %v536, %v536
      %v553 = vmul.f32 %v537, %v537
      %v554 = vmul.f32 %v538, %v538
      %v555 = vmul.f32 %v539, %v539
      %v556 = vmul.f32 %v540, %v540
      %v557 = vmul.f32 %v541, %v541
      %v558 = vmul.f32 %v542, %v542
      %v559 = vmul.f32 %v543, %v543
      %v576 = vrot.slane %v546, 7
      %v577 = vsel %vm485, %v576, %v544
      %v578 = vrot.slane %v548, 6
      %v579 = vsel %vm487, %v578, %v577
      %v580 = vrot.slane %v550, 5
      %v581 = vsel %vm489, %v580, %v579
      %v582 = vrot.slane %v552, 4
      %v583 = vsel %vm491, %v582, %v581
      %v584 = vrot.slane %v554, 3
      %v585 = vsel %vm493, %v584, %v583
      %v586 = vrot.slane %v556, 2
      %v587 = vsel %vm495, %v586, %v585
      %v588 = vrot.slane %v558, 1
      %v589 = vsel %vm497, %v588, %v587
      %v590 = vrot.slane %v547, 7
      %v591 = vsel %vm485, %v590, %v545
      %v592 = vrot.slane %v549, 6
      %v593 = vsel %vm487, %v592, %v591
      %v594 = vrot.slane %v551, 5
      %v595 = vsel %vm489, %v594, %v593
      %v596 = vrot.slane %v553, 4
      %v597 = vsel %vm491, %v596, %v595
      %v598 = vrot.slane %v555, 3
      %v599 = vsel %vm493, %v598, %v597
      %v600 = vrot.slane %v557, 2
      %v601 = vsel %vm495, %v600, %v599
      %v602 = vrot.slane %v559, 1
      %v603 = vsel %vm497, %v602, %v601
      %v606 = vadd.f32 %v589, %v603
      %607 = vadd.xlane.f32.xlu0 %v606
      %v608 = vpop.xlane.xlu0 %607
      %v609 = vrcp.pop 255.0
      %v610 = vmul.f32 %v608, %v609
      %v611 = vrsqrt.pop %v610
      %v612 = vmul.f32 %v610, %v611
      %vm613 = vcmp.eq.f32.partialorder %v610, inf
      %v614 = vsel %vm613, %v610, %v612
      %vm615 = vcmp.eq.f32.partialorder %v610, 0.0
      %v616 = vand.u32 %v610, 2147483648
      %v617 = vsel %vm615, %v616, %v614
      %v618 = vadd.f32 %v617, 1e-05
      %v620 = vrot.slane %v618, 1
      %v621 = vrot.slane %v618, 2
      %v622 = vrot.slane %v618, 3
      %v623 = vrot.slane %v618, 4
      %v624 = vrot.slane %v618, 5
      %v625 = vrot.slane %v618, 6
      %v626 = vrot.slane %v618, 7
      %v635 = vrcp.pop %v618
      %v636 = vmul.f32 %v528, %v635
      %v637 = vmul.f32 %v529, %v635
      %v638 = vrcp.pop %v620
      %v639 = vmul.f32 %v530, %v638
      %v640 = vmul.f32 %v531, %v638
      %v641 = vrcp.pop %v621
      %v642 = vmul.f32 %v532, %v641
      %v643 = vmul.f32 %v533, %v641
      %v644 = vrcp.pop %v622
      %v645 = vmul.f32 %v534, %v644
      %v646 = vmul.f32 %v535, %v644
      %v647 = vrcp.pop %v623
      %v648 = vmul.f32 %v536, %v647
      %v649 = vmul.f32 %v537, %v647
      %v650 = vrcp.pop %v624
      %v651 = vmul.f32 %v538, %v650
      %v652 = vmul.f32 %v539, %v650
      %v653 = vrcp.pop %v625
      %v654 = vmul.f32 %v540, %v653
      %v655 = vmul.f32 %v541, %v653
      %v656 = vrcp.pop %v626
      %v657 = vmul.f32 %v542, %v656
      %v658 = vmul.f32 %v543, %v656
      %v659 = vld [vmem:[%s1] sm:$0xff]
      %661 = vset.pattern.permute.xlu0 0
      %662 = vperm.xlu0 %661, %v659
      %v663 = vpop.permute.xlu0 %662
      %v664 = vrot.slane %v663, 1
      %v665 = vrot.slane %v663, 2
      %v666 = vrot.slane %v663, 3
      %v667 = vrot.slane %v663, 4
      %v668 = vrot.slane %v663, 5
      %v669 = vrot.slane %v663, 6
      %v670 = vrot.slane %v663, 7
      %v679 = vmul.f32 %v636, %v663
      %v680 = vmul.f32 %v637, %v663
      %v681 = vmul.f32 %v639, %v664
      %v682 = vmul.f32 %v640, %v664
      %v683 = vmul.f32 %v642, %v665
      %v684 = vmul.f32 %v643, %v665
      %v685 = vmul.f32 %v645, %v666
      %v686 = vmul.f32 %v646, %v666
      %v687 = vmul.f32 %v648, %v667
      %v688 = vmul.f32 %v649, %v667
      %v689 = vmul.f32 %v651, %v668
      %v690 = vmul.f32 %v652, %v668
      %v691 = vmul.f32 %v654, %v669
      %v692 = vmul.f32 %v655, %v669
      %v693 = vmul.f32 %v657, %v670
      %v694 = vmul.f32 %v658, %v670
      %v695 = vld [vmem:[%s2] sm:$0xff]
      %697 = vset.pattern.permute.xlu0 0
      %698 = vperm.xlu0 %697, %v695
      %v699 = vpop.permute.xlu0 %698
      %v700 = vrot.slane %v699, 1
      %v701 = vrot.slane %v699, 2
      %v702 = vrot.slane %v699, 3
      %v703 = vrot.slane %v699, 4
      %v704 = vrot.slane %v699, 5
      %v705 = vrot.slane %v699, 6
      %v706 = vrot.slane %v699, 7
      %v715 = vadd.f32 %v679, %v699
      %v716 = vadd.f32 %v680, %v699
      %v717 = vadd.f32 %v681, %v700
      %v718 = vadd.f32 %v682, %v700
      %v719 = vadd.f32 %v683, %v701
      %v720 = vadd.f32 %v684, %v701
      %v721 = vadd.f32 %v685, %v702
      %v722 = vadd.f32 %v686, %v702
      %v723 = vadd.f32 %v687, %v703
      %v724 = vadd.f32 %v688, %v703
      %v725 = vadd.f32 %v689, %v704
      %v726 = vadd.f32 %v690, %v704
      %v727 = vadd.f32 %v691, %v705
      %v728 = vadd.f32 %v692, %v705
      %v729 = vadd.f32 %v693, %v706
      %v730 = vadd.f32 %v694, %v706
      %v731 = vxor.u32 %v715, 2147483648
      %v732 = vxor.u32 %v716, 2147483648
      %v733 = vxor.u32 %v717, 2147483648
      %v734 = vxor.u32 %v718, 2147483648
      %v735 = vxor.u32 %v719, 2147483648
      %v736 = vxor.u32 %v720, 2147483648
      %v737 = vxor.u32 %v721, 2147483648
      %v738 = vxor.u32 %v722, 2147483648
      %v739 = vxor.u32 %v723, 2147483648
      %v740 = vxor.u32 %v724, 2147483648
      %v741 = vxor.u32 %v725, 2147483648
      %v742 = vxor.u32 %v726, 2147483648
      %v743 = vxor.u32 %v727, 2147483648
      %v744 = vxor.u32 %v728, 2147483648
      %v745 = vxor.u32 %v729, 2147483648
      %v746 = vxor.u32 %v730, 2147483648
      %v747 = vmul.f32 %v731, 1.442695
      %v748 = vpow.pop %v747
      %v749 = vmul.f32 %v732, 1.442695
      %v750 = vpow.pop %v749
      %v751 = vmul.f32 %v733, 1.442695
      %v752 = vpow.pop %v751
      %v753 = vmul.f32 %v734, 1.442695
      %v754 = vpow.pop %v753
      %v755 = vmul.f32 %v735, 1.442695
      %v756 = vpow.pop %v755
      %v757 = vmul.f32 %v736, 1.442695
      %v758 = vpow.pop %v757
      %v759 = vmul.f32 %v737, 1.442695
      %v760 = vpow.pop %v759
      %v761 = vmul.f32 %v738, 1.442695
      %v762 = vpow.pop %v761
      %v763 = vmul.f32 %v739, 1.442695
      %v764 = vpow.pop %v763
      %v765 = vmul.f32 %v740, 1.442695
      %v766 = vpow.pop %v765
      %v767 = vmul.f32 %v741, 1.442695
      %v768 = vpow.pop %v767
      %v769 = vmul.f32 %v742, 1.442695
      %v770 = vpow.pop %v769
      %v771 = vmul.f32 %v743, 1.442695
      %v772 = vpow.pop %v771
      %v773 = vmul.f32 %v744, 1.442695
      %v774 = vpow.pop %v773
      %v775 = vmul.f32 %v745, 1.442695
      %v776 = vpow.pop %v775
      %v777 = vmul.f32 %v746, 1.442695
      %v778 = vpow.pop %v777
      %v779 = vadd.f32 %v748, 1.0
      %v780 = vadd.f32 %v750, 1.0
      %v781 = vadd.f32 %v752, 1.0
      %v782 = vadd.f32 %v754, 1.0
      %v783 = vadd.f32 %v756, 1.0
      %v784 = vadd.f32 %v758, 1.0
      %v785 = vadd.f32 %v760, 1.0
      %v786 = vadd.f32 %v762, 1.0
      %v787 = vadd.f32 %v764, 1.0
      %v788 = vadd.f32 %v766, 1.0
      %v789 = vadd.f32 %v768, 1.0
      %v790 = vadd.f32 %v770, 1.0
      %v791 = vadd.f32 %v772, 1.0
      %v792 = vadd.f32 %v774, 1.0
      %v793 = vadd.f32 %v776, 1.0
      %v794 = vadd.f32 %v778, 1.0
      %v795 = vrcp.pop %v779
      %v796 = vmul.f32 1.0, %v795
      %v797 = vrcp.pop %v780
      %v798 = vmul.f32 1.0, %v797
      %v799 = vrcp.pop %v781
      %v800 = vmul.f32 1.0, %v799
      %v801 = vrcp.pop %v782
      %v802 = vmul.f32 1.0, %v801
      %v803 = vrcp.pop %v783
      %v804 = vmul.f32 1.0, %v803
      %v805 = vrcp.pop %v784
      %v806 = vmul.f32 1.0, %v805
      %v807 = vrcp.pop %v785
      %v808 = vmul.f32 1.0, %v807
      %v809 = vrcp.pop %v786
      %v810 = vmul.f32 1.0, %v809
      %v811 = vrcp.pop %v787
      %v812 = vmul.f32 1.0, %v811
      %v813 = vrcp.pop %v788
      %v814 = vmul.f32 1.0, %v813
      %v815 = vrcp.pop %v789
      %v816 = vmul.f32 1.0, %v815
      %v817 = vrcp.pop %v790
      %v818 = vmul.f32 1.0, %v817
      %v819 = vrcp.pop %v791
      %v820 = vmul.f32 1.0, %v819
      %v821 = vrcp.pop %v792
      %v822 = vmul.f32 1.0, %v821
      %v823 = vrcp.pop %v793
      %v824 = vmul.f32 1.0, %v823
      %v825 = vrcp.pop %v794
      %v826 = vmul.f32 1.0, %v825
      %v827 = vlaneseq
      %v828 = vshrl.u32 %v827, 7
      %v829 = vsub.s32 0, %v828
      %v830 = vrot.slane %v796, %v829
      %v831 = vlaneseq
      %v832 = vshrl.u32 %v831, 7
      %v833 = vsub.s32 0, %v832
      %v834 = vrot.slane %v798, %v833
      %v835 = vlaneseq
      %v836 = vshrl.u32 %v835, 7
      %v837 = vsub.s32 0, %v836
      %v838 = vrot.slane %v800, %v837
      %v839 = vlaneseq
      %v840 = vshrl.u32 %v839, 7
      %v841 = vsub.s32 0, %v840
      %v842 = vrot.slane %v802, %v841
      %v843 = vlaneseq
      %v844 = vshrl.u32 %v843, 7
      %v845 = vsub.s32 0, %v844
      %v846 = vrot.slane %v804, %v845
      %v847 = vlaneseq
      %v848 = vshrl.u32 %v847, 7
      %v849 = vsub.s32 0, %v848
      %v850 = vrot.slane %v806, %v849
      %v851 = vlaneseq
      %v852 = vshrl.u32 %v851, 7
      %v853 = vsub.s32 0, %v852
      %v854 = vrot.slane %v808, %v853
      %v855 = vlaneseq
      %v856 = vshrl.u32 %v855, 7
      %v857 = vsub.s32 0, %v856
      %v858 = vrot.slane %v810, %v857
      %v859 = vlaneseq
      %v860 = vshrl.u32 %v859, 7
      %v861 = vsub.s32 0, %v860
      %v862 = vrot.slane %v812, %v861
      %v863 = vlaneseq
      %v864 = vshrl.u32 %v863, 7
      %v865 = vsub.s32 0, %v864
      %v866 = vrot.slane %v814, %v865
      %v867 = vlaneseq
      %v868 = vshrl.u32 %v867, 7
      %v869 = vsub.s32 0, %v868
      %v870 = vrot.slane %v816, %v869
      %v871 = vlaneseq
      %v872 = vshrl.u32 %v871, 7
      %v873 = vsub.s32 0, %v872
      %v874 = vrot.slane %v818, %v873
      %v875 = vlaneseq
      %v876 = vshrl.u32 %v875, 7
      %v877 = vsub.s32 0, %v876
      %v878 = vrot.slane %v820, %v877
      %v879 = vlaneseq
      %v880 = vshrl.u32 %v879, 7
      %v881 = vsub.s32 0, %v880
      %v882 = vrot.slane %v822, %v881
      %v883 = vlaneseq
      %v884 = vshrl.u32 %v883, 7
      %v885 = vsub.s32 0, %v884
      %v886 = vrot.slane %v824, %v885
      %v887 = vlaneseq
      %v888 = vshrl.u32 %v887, 7
      %v889 = vsub.s32 0, %v888
      %v890 = vrot.slane %v826, %v889
      %v907 = vcombine.low %v830, %v834
      %v908 = vcombine.low %v838, %v842
      %v909 = vcombine.low %v846, %v850
      %v910 = vcombine.low %v854, %v858
      %v911 = vcombine.low %v862, %v866
      %v912 = vcombine.low %v870, %v874
      %v913 = vcombine.low %v878, %v882
      %v914 = vcombine.low %v886, %v890
      %v923 = vmul.f32 %v171, %v907
      %v924 = vmul.f32 %v172, %v908
      %v925 = vmul.f32 %v173, %v909
      %v926 = vmul.f32 %v174, %v910
      %v927 = vmul.f32 %v175, %v911
      %v928 = vmul.f32 %v176, %v912
      %v929 = vmul.f32 %v177, %v913
      %v930 = vmul.f32 %v178, %v914
      %931 = vst [vmem:[%s170] sm:$0xff] %v923
      %932 = vst [vmem:[%s170 + $0x8] sm:$0xff] %v924
      %933 = vst [vmem:[%s170 + $0x10] sm:$0xff] %v925
      %934 = vst [vmem:[%s170 + $0x18] sm:$0xff] %v926
      %935 = vst [vmem:[%s170 + $0x20] sm:$0xff] %v927
      %936 = vst [vmem:[%s170 + $0x28] sm:$0xff] %v928
      %937 = vst [vmem:[%s170 + $0x30] sm:$0xff] %v929
      %938 = vst [vmem:[%s170 + $0x38] sm:$0xff] %v930
      %p939 = scmp.lt.s32.totalorder %s14, 1
      %s940 = scalar_select %p939, %s14, 1
      %s941 = smul.addr %s940, 16
      %s942 = smul.addr %s941, 4
      %s943 = scalar_lea.vmem %s3, %s942
      // Predicated region
      $region33: #{sge_pallas.1} parent=31 // pred_check
        %p944 = pneg %p100
      $region34: #{sge_pallas.1} parent=31 // pred_check_branch
        %946 = sbr.rel (%p944) target = $region36
      $region35: #{sge_pallas.1} parent=31 // pred_region
        _
      $region36: #{sge_pallas.1} parent=31 // pred_fallthru
        _
    $region32: #{sge_pallas.1} parent=5 // pred_fallthru
      _
    %p947 = scmp.le.s32.totalorder 2, %s9
    // Predicated region
    $region37: #{sge_pallas.1} parent=5 // pred_check
      %p948 = pneg %p947
    $region38: #{sge_pallas.1} parent=5 // pred_check_branch
      %950 = sbr.rel (%p948) target = $region40
    $region39: #{sge_pallas.1} parent=5 // pred_region
      %s951 = ssub.s32 %s9, 2
      // Predicated region
      $region41: #{sge_pallas.1} parent=39 // pred_check
        %p952 = pneg %p106
      $region42: #{sge_pallas.1} parent=39 // pred_check_branch
        %954 = sbr.rel (%p952) target = $region44
      $region43: #{sge_pallas.1} parent=39 // pred_region
        %p955 = scmp.lt.s32.totalorder %s15, 1
        %s956 = scalar_select %p955, %s15, 1
        %s957 = smul.addr %s956, 16
        %s958 = smul.addr %s957, 4
        %s959 = scalar_lea.vmem %s3, %s958
      $region44: #{sge_pallas.1} parent=39 // pred_fallthru
        _
    $region40: #{sge_pallas.1} parent=5 // pred_fallthru
      _
  $region6: #{sge_pallas.1} parent=0 // loop_footer
    %s13 = sadd.s32 1, %s9
  $region7: #{sge_pallas.1} parent=0 // loop_footer_branch
    %8 = sbr.rel target = $region3
  $region8: #{sge_pallas.1} parent=0 // loop_exit
    _

</llo_original>
